<compile_context>
chip_gen: v6e
topology: v6e:2x2x1
jax: 0.10.0
libtpu: 0.0.40
codegen_flags: <defaults>
</compile_context>

<pallas_src>
import jax
import jax.numpy as jnp
from jax.experimental import pallas as pl
from jax.experimental.pallas import tpu as pltpu


def _round_up(x, m):
    return ((x + m - 1) // m) * m


def _pad_lanes(x):
    # VMEM pipeline buffers pad the minor (lane) dim to 128.
    return _round_up(max(int(x), 1), 128)


def _mean_vfe_kernel(vox_ref, num_ref, out_ref):
    # vox_ref: (TN, P*C)   num_ref: (TN, 1) float32   out_ref: (TN, C)
    pc = vox_ref.shape[1]
    c = out_ref.shape[1]
    x = vox_ref[...].astype(jnp.float32)

    # Constant (P*C, C) block-diagonal ones matrix: W[k, j] = 1 iff k % C == j.
    # Summing over the P points then runs on the (otherwise idle) MXU.
    k_idx = jax.lax.broadcasted_iota(jnp.int32, (pc, c), 0)
    j_idx = jax.lax.broadcasted_iota(jnp.int32, (pc, c), 1)
    w = (k_idx % c == j_idx).astype(jnp.float32)

    sums = jnp.dot(x, w, preferred_element_type=jnp.float32)        # (TN, C)
    denom = jnp.maximum(num_ref[...], 1.0)                           # clamp_min(n, 1), (TN, 1)
    out_ref[...] = (sums / denom).astype(out_ref.dtype)              # exact divide


def mean_vfe(voxel_features, voxel_num_points, *, tile_n=16384):
    """voxel_features: (N, P, C); voxel_num_points: (N,) -> (N, C) mean over valid points."""
    N, P, C = voxel_features.shape
    PC = P * C
    out_dtype = voxel_features.dtype
    in_itemsize = jnp.dtype(voxel_features.dtype).itemsize
    out_itemsize = jnp.dtype(out_dtype).itemsize

    # Natural layout: collapsing the trailing (P, C) dims is a free contiguous reshape,
    # so the kernel reads voxel_features straight from HBM (no transpose pass).
    vox2d = voxel_features.reshape(N, PC)
    num = voxel_num_points.astype(jnp.float32).reshape(N, 1)

    # --- Tile-size selection -------------------------------------------------
    # Per-voxel-row VMEM cost of the double-buffered pipeline (lane-padded blocks).
    per_row_bytes = 2 * (_pad_lanes(PC) * in_itemsize
                         + _pad_lanes(1) * 4
                         + _pad_lanes(C) * out_itemsize)
    try:
        vmem_cap = int(pltpu.get_tpu_info().vmem_capacity_bytes)
    except Exception:
        vmem_cap = 64 * 1024 * 1024   # conservative (v7x physical VMEM)
    budget = vmem_cap // 3            # leave ample headroom for Mosaic internals

    tn_vmem = max(128, (budget // per_row_bytes) // 128 * 128)
    tn_steps = _round_up(pl.cdiv(N, 8), 128)      # keep >=8 grid steps for v7x's 2 TCs
    tn = max(128, min(tile_n, tn_vmem, tn_steps, _round_up(N, 128)))

    grid = pl.cdiv(N, tn)
    need_bytes = tn * per_row_bytes
    vmem_limit = int(min(vmem_cap, max(32 * 1024 * 1024, need_bytes + (16 * 1024 * 1024))))

    out = pl.pallas_call(
        _mean_vfe_kernel,
        out_shape=jax.ShapeDtypeStruct((N, C), out_dtype),
        grid_spec=pltpu.PrefetchScalarGridSpec(
            num_scalar_prefetch=0,
            grid=(grid,),
            in_specs=[
                pl.BlockSpec((tn, PC), lambda i: (i, 0)),
                pl.BlockSpec((tn, 1), lambda i: (i, 0)),
            ],
            out_specs=pl.BlockSpec((tn, C), lambda i: (i, 0)),
        ),
        compiler_params=pltpu.CompilerParams(
            dimension_semantics=("parallel",),
            vmem_limit_bytes=vmem_limit),
        cost_estimate=pl.CostEstimate(
            flops=int(N * (P - 1) * C + N * C),
            transcendentals=int(N),
            bytes_accessed=int(N * PC * in_itemsize + N * 4 + N * C * out_itemsize)),
    )(vox2d, num)

    return out


def mean_vfe_forward(batch_dict):
    """Mirrors MeanVFE.forward on a dict of JAX arrays."""
    if "lidar_voxels" in batch_dict:
        batch_dict["lidar_voxel_features"] = mean_vfe(
            batch_dict["lidar_voxels"], batch_dict["lidar_voxel_num_points"])
        batch_dict["radar_voxel_features"] = mean_vfe(
            batch_dict["radar_voxels"], batch_dict["radar_voxel_num_points"])
    else:
        batch_dict["voxel_features"] = mean_vfe(
            batch_dict["voxels"], batch_dict["voxel_num_points"])
    return batch_dict


if __name__ == "__main__":
    key = jax.random.PRNGKey(0)
    k1, k2, k3, k4 = jax.random.split(key, 4)

    # Small shapes: num_voxels=100 (not a multiple of 128 to exercise the ragged
    # tail / oversize block), max_points_per_voxel=8, C=4 point features.
    N, P, C = 100, 8, 4
    voxels = jax.random.normal(k1, (N, P, C), dtype=jnp.float32)
    voxel_num_points = jax.random.randint(k2, (N,), 0, P + 1, dtype=jnp.int32)
    # Zero out points beyond the count (same convention as the voxelizer feeding MeanVFE).
    pt_mask = (jnp.arange(P)[None, :] < voxel_num_points[:, None])[..., None]
    voxels = voxels * pt_mask.astype(voxels.dtype)

    batch_dict = {"voxels": voxels, "voxel_num_points": voxel_num_points}
    batch_dict = mean_vfe_forward(batch_dict)
    out = jax.block_until_ready(batch_dict["voxel_features"])

    # Reference (plain JAX, same semantics as the PyTorch module).
    ref = voxels.sum(axis=1) / jnp.maximum(
        voxel_num_points.reshape(-1, 1).astype(jnp.float32), 1.0)
    assert out.shape == (N, C)
    assert jnp.allclose(out, ref, atol=1e-3, rtol=1e-3), float(jnp.max(jnp.abs(out - ref)))

    # Also exercise the lidar/radar branch.
    lidar_voxels = jax.random.normal(k3, (64, P, C), dtype=jnp.float32)
    radar_voxels = jax.random.normal(k4, (48, P, C), dtype=jnp.float32)
    lidar_num = jnp.full((64,), 3, dtype=jnp.int32)
    radar_num = jnp.zeros((48,), dtype=jnp.int32)
    bd2 = {
        "lidar_voxels": lidar_voxels,
        "lidar_voxel_num_points": lidar_num,
        "radar_voxels": radar_voxels,
        "radar_voxel_num_points": radar_num,
    }
    bd2 = mean_vfe_forward(bd2)
    lidar_out = jax.block_until_ready(bd2["lidar_voxel_features"])
    radar_out = jax.block_until_ready(bd2["radar_voxel_features"])
    assert lidar_out.shape == (64, C)
    assert radar_out.shape == (48, C)
    lidar_ref = lidar_voxels.sum(axis=1) / jnp.maximum(
        lidar_num.reshape(-1, 1).astype(jnp.float32), 1.0)
    radar_ref = radar_voxels.sum(axis=1) / jnp.maximum(
        radar_num.reshape(-1, 1).astype(jnp.float32), 1.0)
    assert jnp.allclose(lidar_out, lidar_ref, atol=1e-3, rtol=1e-3)
    assert jnp.allclose(radar_out, radar_ref, atol=1e-3, rtol=1e-3)

    print("KERNEL_OK")
</pallas_src>

<mosaic_0001>
module attributes {stable_mosaic.version = 11 : i64} {
  func.func @_mean_vfe_kernel(%arg0: i32, %arg1: memref<128x32xf32, #tpu.memory_space<vmem>>, %arg2: memref<128x1xf32, #tpu.memory_space<vmem>>, %arg3: memref<128x4xf32, #tpu.memory_space<vmem>>) attributes {dimension_semantics = [#tpu.dimension_semantics<parallel>], iteration_bounds = array<i64: 1>, scalar_prefetch = 0 : i64, scratch_operands = 0 : i64, tpu.core_type = #tpu.core_type<tc>, window_params = [{transform_indices = @transform_0, window_bounds = array<i64: 128, 32>}, {transform_indices = @transform_1, window_bounds = array<i64: 128, 1>}, {transform_indices = @transform_2, window_bounds = array<i64: 128, 4>}]} {
    %c0 = arith.constant 0 : index
    %c0_0 = arith.constant 0 : index
    %0 = vector.load %arg1[%c0, %c0_0] : memref<128x32xf32, #tpu.memory_space<vmem>>, vector<128x32xf32>
    %1 = tpu.iota {dimensions = array<i32: 0>} : vector<32x4xi32>
    %2 = tpu.iota {dimensions = array<i32: 1>} : vector<32x4xi32>
    %c4_i32 = arith.constant 4 : i32
    %c0_i32 = arith.constant 0 : i32
    %3 = arith.cmpi eq, %c4_i32, %c0_i32 : i32
    %c1_i32 = arith.constant 1 : i32
    %4 = arith.select %3, %c1_i32, %c4_i32 : i32
    %5 = vector.broadcast %4 : i32 to vector<32x4xi32>
    %6 = arith.remsi %1, %5 : vector<32x4xi32>
    %c0_i32_1 = arith.constant 0 : i32
    %7 = vector.broadcast %c0_i32_1 : i32 to vector<32x4xi32>
    %8 = arith.cmpi ne, %6, %7 : vector<32x4xi32>
    %c0_i32_2 = arith.constant 0 : i32
    %9 = vector.broadcast %c0_i32_2 : i32 to vector<32x4xi32>
    %10 = arith.cmpi slt, %6, %9 : vector<32x4xi32>
    %c0_i32_3 = arith.constant 0 : i32
    %11 = arith.cmpi slt, %4, %c0_i32_3 : i32
    %12 = vector.broadcast %11 : i1 to vector<32x4xi1>
    %13 = vector.broadcast %12 : vector<32x4xi1> to vector<32x4xi1>
    %14 = arith.xori %10, %13 : vector<32x4xi1>
    %15 = arith.andi %14, %8 : vector<32x4xi1>
    %16 = vector.broadcast %4 : i32 to vector<32x4xi32>
    %17 = arith.addi %6, %16 : vector<32x4xi32>
    %18 = arith.select %15, %17, %6 : vector<32x4xi1>, vector<32x4xi32>
    %19 = arith.cmpi eq, %18, %2 : vector<32x4xi32>
    %20 = arith.extui %19 : vector<32x4xi1> to vector<32x4xi32>
    %21 = arith.sitofp %20 : vector<32x4xi32> to vector<32x4xf32>
    %cst = arith.constant dense<0.000000e+00> : vector<128x4xf32>
    %22 = tpu.matmul %0, %21, %cst {dimension_numbers = #tpu.dot_dimension_numbers<[1], [0], [0], [1], [0, 0, 1, 1], [], []>} : vector<128x32xf32>, vector<32x4xf32>, vector<128x4xf32> -> vector<128x4xf32>
    %c0_4 = arith.constant 0 : index
    %c0_5 = arith.constant 0 : index
    %23 = vector.load %arg2[%c0_4, %c0_5] : memref<128x1xf32, #tpu.memory_space<vmem>>, vector<128x1xf32>
    %cst_6 = arith.constant 1.000000e+00 : f32
    %24 = vector.broadcast %cst_6 : f32 to vector<128x1xf32>
    %25 = arith.maximumf %23, %24 : vector<128x1xf32>
    %26 = vector.broadcast %25 : vector<128x1xf32> to vector<128x4xf32>
    %27 = arith.divf %22, %26 : vector<128x4xf32>
    %c0_7 = arith.constant 0 : index
    %c0_8 = arith.constant 0 : index
    %28 = vector.load %arg3[%c0_7, %c0_8] : memref<128x4xf32, #tpu.memory_space<vmem>>, vector<128x4xf32>
    tpu.vector_store %arg3[%c0_7, %c0_8], %27 {strides = array<i32>} : memref<128x4xf32, #tpu.memory_space<vmem>>, vector<128x4xf32>,
    return
  }
  func.func @transform_0(%arg0: i32) -> (i32, i32) {
    %c0_i32 = arith.constant 0 : i32
    %c0_i32_0 = arith.constant 0 : i32
    return %arg0, %c0_i32 : i32, i32
  }
  func.func @transform_1(%arg0: i32) -> (i32, i32) {
    %c0_i32 = arith.constant 0 : i32
    %c0_i32_0 = arith.constant 0 : i32
    return %arg0, %c0_i32 : i32, i32
  }
  func.func @transform_2(%arg0: i32) -> (i32, i32) {
    %c0_i32 = arith.constant 0 : i32
    %c0_i32_0 = arith.constant 0 : i32
    return %arg0, %c0_i32 : i32, i32
  }
}

</mosaic_0001>

<llo_original>
// kernel: tpu_custom_call.1
$region0: #{tpu_custom_call.1}
  #allocation0 [shape = 'u32[]', space=smem, size = 0x4, offset = 0x4, fixed_abs, tag = 'smem constant byte address 0x4 - core index']
  #allocation1 [shape = 'u32[144,128]{1,0:T(1,128)}', space=vmem, size = 0x12000, scoped, tag = 'internal scratch']
  %s0 = inlined_call_operand.vmem [shape: f32[100,32], index: 0, kind: input, shape index: {}]
  %s1 = inlined_call_operand.vmem [shape: f32[100,1], index: 1, kind: input, shape index: {}]
  %s2 = inlined_call_operand.vmem [shape: f32[100,4], index: 2, kind: output, shape index: {}]
  %s3 = sld [smem:[#allocation0]]
  $region52: #{tpu_custom_call.1} parent=0
    _
  %s5 = ssub.s32 1, %s3
  %s6 = scalar_select 0, %s5, %s3
  $region1: #{tpu_custom_call.1} parent=0
    #allocation2 [shape = 'u8[65536]{0}', space=vmem, size = 0x10000, scoped, tag = 'output window, operand 0, single buffered']
    // Predicated region
    $region2: #{tpu_custom_call.1} parent=1 // pred_check
      _
    $region3: #{tpu_custom_call.1} parent=1 // pred_check_branch
      %8 = sbr.rel (0) target = $region5
    $region4: #{tpu_custom_call.1} parent=1 // pred_region
      _
    $region5: #{tpu_custom_call.1} parent=1 // pred_fallthru
      _
    // Predicated region
    $region6: #{tpu_custom_call.1} parent=1 // pred_check
      _
    $region7: #{tpu_custom_call.1} parent=1 // pred_check_branch
      %10 = sbr.rel (0) target = $region9
    $region8: #{tpu_custom_call.1} parent=1 // pred_region
      _
    $region9: #{tpu_custom_call.1} parent=1 // pred_fallthru
      _
    %v11 = vld [vmem:[%s0] sm:$0xff]
    %v12 = vld [vmem:[%s0 + $0x8] sm:$0xff]
    %v13 = vld [vmem:[%s0 + $0x10] sm:$0xff]
    %v14 = vld [vmem:[%s0 + $0x18] sm:$0xff]
    %v15 = vld [vmem:[%s0 + $0x20] sm:$0xff]
    %v16 = vld [vmem:[%s0 + $0x28] sm:$0xff]
    %v17 = vld [vmem:[%s0 + $0x30] sm:$0xff]
    %v18 = vld [vmem:[%s0 + $0x38] sm:$0xff]
    %v19 = vld [vmem:[%s0 + $0x40] sm:$0xff]
    %v20 = vld [vmem:[%s0 + $0x48] sm:$0xff]
    %v21 = vld [vmem:[%s0 + $0x50] sm:$0xff]
    %v22 = vld [vmem:[%s0 + $0x58] sm:$0xff]
    %v23 = vld [vmem:[%s0 + $0x60] sm:$0xff]
    %v24 = vld [vmem:[%s0 + $0x68] sm:$0xff]
    %v25 = vld [vmem:[%s0 + $0x70] sm:$0xff]
    %v26 = vld [vmem:[%s0 + $0x78] sm:$0xff]
    %v27 = vlaneseq
    %v28 = vshrl.u32 %v27, 7
    %v29 = vadd.s32 %v28, 8
    %v30 = vadd.s32 %v28, 16
    %v31 = vadd.s32 %v28, 24
    %v32 = vlaneseq
    %v33 = vand.u32 %v32, 127
    %vm34 = vcmp.lt.s32.totalorder %v28, 0
    %v35 = vsub.s32 0, %v28
    %v36 = vsel %vm34, %v35, %v28
    %v37 = vshrl.u32 %v36, 2
    %v38 = vand.u32 %v36, 3
    %v39 = vsub.s32 0, %v38
    %v40 = vsel %vm34, %v39, %v38
    %vm41 = vcmp.lt.s32.totalorder %v29, 0
    %v42 = vsub.s32 0, %v29
    %v43 = vsel %vm41, %v42, %v29
    %v44 = vshrl.u32 %v43, 2
    %v45 = vand.u32 %v43, 3
    %v46 = vsub.s32 0, %v45
    %v47 = vsel %vm41, %v46, %v45
    %vm48 = vcmp.lt.s32.totalorder %v30, 0
    %v49 = vsub.s32 0, %v30
    %v50 = vsel %vm48, %v49, %v30
    %v51 = vshrl.u32 %v50, 2
    %v52 = vand.u32 %v50, 3
    %v53 = vsub.s32 0, %v52
    %v54 = vsel %vm48, %v53, %v52
    %vm55 = vcmp.lt.s32.totalorder %v31, 0
    %v56 = vsub.s32 0, %v31
    %v57 = vsel %vm55, %v56, %v31
    %v58 = vshrl.u32 %v57, 2
    %v59 = vand.u32 %v57, 3
    %v60 = vsub.s32 0, %v59
    %v61 = vsel %vm55, %v60, %v59
    %vm62 = vcmp.ne.s32.totalorder %v40, 0
    %vm63 = vcmp.ne.s32.totalorder %v47, 0
    %vm64 = vcmp.ne.s32.totalorder %v54, 0
    %vm65 = vcmp.ne.s32.totalorder %v61, 0
    %vm66 = vcmp.lt.s32.totalorder %v40, 0
    %vm67 = vcmp.lt.s32.totalorder %v47, 0
    %vm68 = vcmp.lt.s32.totalorder %v54, 0
    %vm69 = vcmp.lt.s32.totalorder %v61, 0
    %vm70 = vmand %vm66, %vm62
    %vm71 = vmand %vm67, %vm63
    %vm72 = vmand %vm68, %vm64
    %vm73 = vmand %vm69, %vm65
    %v74 = vadd.s32 %v40, 4
    %v75 = vadd.s32 %v47, 4
    %v76 = vadd.s32 %v54, 4
    %v77 = vadd.s32 %v61, 4
    %v78 = vsel %vm70, %v74, %v40
    %v79 = vsel %vm71, %v75, %v47
    %v80 = vsel %vm72, %v76, %v54
    %v81 = vsel %vm73, %v77, %v61
    %vm82 = vcmp.eq.s32.totalorder %v78, %v33
    %vm83 = vcmp.eq.s32.totalorder %v79, %v33
    %vm84 = vcmp.eq.s32.totalorder %v80, %v33
    %vm85 = vcmp.eq.s32.totalorder %v81, %v33
    %v86 = vsel %vm82, 1, 0
    %v87 = vsel %vm83, 1, 0
    %v88 = vsel %vm84, 1, 0
    %v89 = vsel %vm85, 1, 0
    %v90 = vcvt.s32.f32 %v86
    %v91 = vcvt.s32.f32 %v87
    %v92 = vcvt.s32.f32 %v88
    %v93 = vcvt.s32.f32 %v89
    %vm94 = vcmask 261120
    %v96 = vsel %vm94, %v11, 0
    %v99 = vsel %vm94, %v12, 0
    %v102 = vsel %vm94, %v13, 0
    %v105 = vsel %vm94, %v14, 0
    %v108 = vsel %vm94, %v15, 0
    %v111 = vsel %vm94, %v16, 0
    %v114 = vsel %vm94, %v17, 0
    %v117 = vsel %vm94, %v18, 0
    %v120 = vsel %vm94, %v19, 0
    %v123 = vsel %vm94, %v20, 0
    %v126 = vsel %vm94, %v21, 0
    %v129 = vsel %vm94, %v22, 0
    %v132 = vsel %vm94, %v23, 0
    %v135 = vsel %vm94, %v24, 0
    %v138 = vsel %vm94, %v25, 0
    %v141 = vsel %vm94, %v26, 0
    %143 = vmatprep.subr.mxu0 0.0
    %144 = vmatpush1.msra.mxu0 0.0
    %145 = vmatprep.subr.mxu0 0.0
    %146 = vmatpush1.msra.mxu0 0.0
    %147 = vmatprep.subr.mxu0 0.0
    %148 = vmatpush1.msra.mxu0 0.0
    %149 = vmatprep.subr.mxu0 0.0
    %150 = vmatpush1.msra.mxu0 0.0
    %151 = vmatprep.subr.mxu0 0.0
    %152 = vmatpush1.msra.mxu0 0.0
    %153 = vmatprep.subr.mxu0 0.0
    %154 = vmatpush1.msra.mxu0 0.0
    %155 = vmatprep.subr.mxu0 0.0
    %156 = vmatpush1.msra.mxu0 0.0
    %157 = vmatprep.subr.mxu0 0.0
    %158 = vmatpush1.msra.mxu0 0.0
    %159 = vmatprep.subr.mxu0 0.0
    %160 = vmatpush1.msra.mxu0 0.0
    %161 = vmatprep.subr.mxu0 0.0
    %162 = vmatpush1.msra.mxu0 0.0
    %163 = vmatprep.subr.mxu0 0.0
    %164 = vmatpush1.msra.mxu0 0.0
    %165 = vmatprep.subr.mxu0 0.0
    %166 = vmatpush1.msra.mxu0 0.0
    %167 = vmatprep.subr.mxu0 0.0
    %168 = vmatpush1.msra.mxu0 %v93
    %169 = vmatprep.subr.mxu0 0.0
    %170 = vmatpush1.msra.mxu0 %v92
    %171 = vmatprep.subr.mxu0 0.0
    %172 = vmatpush1.msra.mxu0 %v91
    %173 = vmatprep.subr.mxu0 0.0
    %174 = vmatpush1.msra.mxu0 %v90
    %175 = vmatprep.subr.mxu0 0.0
    %176 = vmatpush2.msra.mxu0 0.0
    %177 = vmatprep.subr.mxu0 0.0
    %178 = vmatpush2.msra.mxu0 0.0
    %179 = vmatprep.subr.mxu0 0.0
    %180 = vmatpush2.msra.mxu0 0.0
    %181 = vmatprep.subr.mxu0 0.0
    %182 = vmatpush2.msra.mxu0 0.0
    %183 = vmatprep.subr.mxu0 0.0
    %184 = vmatpush2.msra.mxu0 0.0
    %185 = vmatprep.subr.mxu0 0.0
    %186 = vmatpush2.msra.mxu0 0.0
    %187 = vmatprep.subr.mxu0 0.0
    %188 = vmatpush2.msra.mxu0 0.0
    %189 = vmatprep.subr.mxu0 0.0
    %190 = vmatpush2.msra.mxu0 0.0
    %191 = vmatprep.subr.mxu0 0.0
    %192 = vmatpush2.msra.mxu0 0.0
    %193 = vmatprep.subr.mxu0 0.0
    %194 = vmatpush2.msra.mxu0 0.0
    %195 = vmatprep.subr.mxu0 0.0
    %196 = vmatpush2.msra.mxu0 0.0
    %197 = vmatprep.subr.mxu0 0.0
    %198 = vmatpush2.msra.mxu0 0.0
    %199 = vmatprep.subr.mxu0 0.0
    %200 = vmatpush2.msra.mxu0 0.0
    %201 = vmatprep.subr.mxu0 0.0
    %202 = vmatpush2.msra.mxu0 0.0
    %203 = vmatprep.subr.mxu0 0.0
    %204 = vmatpush2.msra.mxu0 0.0
    %205 = vmatprep.subr.mxu0 0.0
    %206 = vmatpush2.msra.mxu0 0.0
    %207 = vmatprep.mubr.f32.mxu0 0.0
    %208 = vmatmul.mubr.f32.gmra.mxu0 %v96
    %v209 = vpop.f32.mrf.mxu0
    %v210 = vadd.f32 0.0, %v209
    %v211 = vpop.f32.mrf.mxu0
    %212 = vmatprep.mubr.f32.mxu0 0.0
    %213 = vmatmul.mubr.f32.gmra.mxu0 %v99
    %v214 = vpop.f32.mrf.mxu0
    %v215 = vadd.f32 0.0, %v214
    %v216 = vpop.f32.mrf.mxu0
    %217 = vmatprep.mubr.f32.mxu0 0.0
    %218 = vmatmul.mubr.f32.gmra.mxu0 %v102
    %v219 = vpop.f32.mrf.mxu0
    %v220 = vadd.f32 0.0, %v219
    %v221 = vpop.f32.mrf.mxu0
    %222 = vmatprep.mubr.f32.mxu0 0.0
    %223 = vmatmul.mubr.f32.gmra.mxu0 %v105
    %v224 = vpop.f32.mrf.mxu0
    %v225 = vadd.f32 0.0, %v224
    %v226 = vpop.f32.mrf.mxu0
    %227 = vmatprep.mubr.f32.mxu0 0.0
    %228 = vmatmul.mubr.f32.gmra.mxu0 %v108
    %v229 = vpop.f32.mrf.mxu0
    %v230 = vadd.f32 0.0, %v229
    %v231 = vpop.f32.mrf.mxu0
    %232 = vmatprep.mubr.f32.mxu0 0.0
    %233 = vmatmul.mubr.f32.gmra.mxu0 %v111
    %v234 = vpop.f32.mrf.mxu0
    %v235 = vadd.f32 0.0, %v234
    %v236 = vpop.f32.mrf.mxu0
    %237 = vmatprep.mubr.f32.mxu0 0.0
    %238 = vmatmul.mubr.f32.gmra.mxu0 %v114
    %v239 = vpop.f32.mrf.mxu0
    %v240 = vadd.f32 0.0, %v239
    %v241 = vpop.f32.mrf.mxu0
    %242 = vmatprep.mubr.f32.mxu0 0.0
    %243 = vmatmul.mubr.f32.gmra.mxu0 %v117
    %v244 = vpop.f32.mrf.mxu0
    %v245 = vadd.f32 0.0, %v244
    %v246 = vpop.f32.mrf.mxu0
    %247 = vmatprep.mubr.f32.mxu0 0.0
    %248 = vmatmul.mubr.f32.gmra.mxu0 %v120
    %v249 = vpop.f32.mrf.mxu0
    %v250 = vadd.f32 0.0, %v249
    %v251 = vpop.f32.mrf.mxu0
    %252 = vmatprep.mubr.f32.mxu0 0.0
    %253 = vmatmul.mubr.f32.gmra.mxu0 %v123
    %v254 = vpop.f32.mrf.mxu0
    %v255 = vadd.f32 0.0, %v254
    %v256 = vpop.f32.mrf.mxu0
    %257 = vmatprep.mubr.f32.mxu0 0.0
    %258 = vmatmul.mubr.f32.gmra.mxu0 %v126
    %v259 = vpop.f32.mrf.mxu0
    %v260 = vadd.f32 0.0, %v259
    %v261 = vpop.f32.mrf.mxu0
    %262 = vmatprep.mubr.f32.mxu0 0.0
    %263 = vmatmul.mubr.f32.gmra.mxu0 %v129
    %v264 = vpop.f32.mrf.mxu0
    %v265 = vadd.f32 0.0, %v264
    %v266 = vpop.f32.mrf.mxu0
    %267 = vmatprep.mubr.f32.mxu0 0.0
    %268 = vmatmul.mubr.f32.gmra.mxu0 %v132
    %v269 = vpop.f32.mrf.mxu0
    %v270 = vadd.f32 0.0, %v269
    %v271 = vpop.f32.mrf.mxu0
    %272 = vmatprep.mubr.f32.mxu0 0.0
    %273 = vmatmul.mubr.f32.gmra.mxu0 %v135
    %v274 = vpop.f32.mrf.mxu0
    %v275 = vadd.f32 0.0, %v274
    %v276 = vpop.f32.mrf.mxu0
    %277 = vmatprep.mubr.f32.mxu0 0.0
    %278 = vmatmul.mubr.f32.gmra.mxu0 %v138
    %v279 = vpop.f32.mrf.mxu0
    %v280 = vadd.f32 0.0, %v279
    %v281 = vpop.f32.mrf.mxu0
    %282 = vmatprep.mubr.f32.mxu0 0.0
    %283 = vmatmul.mubr.f32.gmra.mxu0 %v141
    %v284 = vpop.f32.mrf.mxu0
    %v285 = vadd.f32 0.0, %v284
    %v286 = vpop.f32.mrf.mxu0
    %287 = vdwg.mxu0
    %v288 = vld [vmem:[%s1] sm:$0xff]
    %v289 = vld [vmem:[%s1 + $0x8] sm:$0xff]
    %v290 = vld [vmem:[%s1 + $0x10] sm:$0xff]
    %v291 = vld [vmem:[%s1 + $0x18] sm:$0xff]
    %v292 = vld [vmem:[%s1 + $0x20] sm:$0xff]
    %v293 = vld [vmem:[%s1 + $0x28] sm:$0xff]
    %v294 = vld [vmem:[%s1 + $0x30] sm:$0xff]
    %v295 = vld [vmem:[%s1 + $0x38] sm:$0xff]
    %v296 = vld [vmem:[%s1 + $0x40] sm:$0xff]
    %v297 = vld [vmem:[%s1 + $0x48] sm:$0xff]
    %v298 = vld [vmem:[%s1 + $0x50] sm:$0xff]
    %v299 = vld [vmem:[%s1 + $0x58] sm:$0xff]
    %v300 = vld [vmem:[%s1 + $0x60] sm:$0xff]
    %v301 = vld [vmem:[%s1 + $0x68] sm:$0xff]
    %v302 = vld [vmem:[%s1 + $0x70] sm:$0xff]
    %v303 = vld [vmem:[%s1 + $0x78] sm:$0xff]
    %v304 = vmax.f32 %v288, 1.0
    %v305 = vmax.f32 %v289, 1.0
    %v306 = vmax.f32 %v290, 1.0
    %v307 = vmax.f32 %v291, 1.0
    %v308 = vmax.f32 %v292, 1.0
    %v309 = vmax.f32 %v293, 1.0
    %v310 = vmax.f32 %v294, 1.0
    %v311 = vmax.f32 %v295, 1.0
    %v312 = vmax.f32 %v296, 1.0
    %v313 = vmax.f32 %v297, 1.0
    %v314 = vmax.f32 %v298, 1.0
    %v315 = vmax.f32 %v299, 1.0
    %v316 = vmax.f32 %v300, 1.0
    %v317 = vmax.f32 %v301, 1.0
    %v318 = vmax.f32 %v302, 1.0
    %v319 = vmax.f32 %v303, 1.0
    %321 = vset.pattern.permute.xlu0 0
    %322 = vperm.xlu0 %321, %v304
    %v323 = vpop.permute.xlu0 %322
    %326 = vset.pattern.permute.xlu0 0
    %327 = vperm.xlu0 %326, %v305
    %v328 = vpop.permute.xlu0 %327
    %331 = vset.pattern.permute.xlu0 0
    %332 = vperm.xlu0 %331, %v306
    %v333 = vpop.permute.xlu0 %332
    %336 = vset.pattern.permute.xlu0 0
    %337 = vperm.xlu0 %336, %v307
    %v338 = vpop.permute.xlu0 %337
    %341 = vset.pattern.permute.xlu0 0
    %342 = vperm.xlu0 %341, %v308
    %v343 = vpop.permute.xlu0 %342
    %346 = vset.pattern.permute.xlu0 0
    %347 = vperm.xlu0 %346, %v309
    %v348 = vpop.permute.xlu0 %347
    %351 = vset.pattern.permute.xlu0 0
    %352 = vperm.xlu0 %351, %v310
    %v353 = vpop.permute.xlu0 %352
    %356 = vset.pattern.permute.xlu0 0
    %357 = vperm.xlu0 %356, %v311
    %v358 = vpop.permute.xlu0 %357
    %361 = vset.pattern.permute.xlu0 0
    %362 = vperm.xlu0 %361, %v312
    %v363 = vpop.permute.xlu0 %362
    %366 = vset.pattern.permute.xlu0 0
    %367 = vperm.xlu0 %366, %v313
    %v368 = vpop.permute.xlu0 %367
    %371 = vset.pattern.permute.xlu0 0
    %372 = vperm.xlu0 %371, %v314
    %v373 = vpop.permute.xlu0 %372
    %376 = vset.pattern.permute.xlu0 0
    %377 = vperm.xlu0 %376, %v315
    %v378 = vpop.permute.xlu0 %377
    %381 = vset.pattern.permute.xlu0 0
    %382 = vperm.xlu0 %381, %v316
    %v383 = vpop.permute.xlu0 %382
    %386 = vset.pattern.permute.xlu0 0
    %387 = vperm.xlu0 %386, %v317
    %v388 = vpop.permute.xlu0 %387
    %391 = vset.pattern.permute.xlu0 0
    %392 = vperm.xlu0 %391, %v318
    %v393 = vpop.permute.xlu0 %392
    %396 = vset.pattern.permute.xlu0 0
    %397 = vperm.xlu0 %396, %v319
    %v398 = vpop.permute.xlu0 %397
    %v400 = vrcp.pop %v323
    %v401 = vmul.f32 %v210, %v400
    %v402 = vrcp.pop %v328
    %v403 = vmul.f32 %v215, %v402
    %v404 = vrcp.pop %v333
    %v405 = vmul.f32 %v220, %v404
    %v406 = vrcp.pop %v338
    %v407 = vmul.f32 %v225, %v406
    %v408 = vrcp.pop %v343
    %v409 = vmul.f32 %v230, %v408
    %v410 = vrcp.pop %v348
    %v411 = vmul.f32 %v235, %v410
    %v412 = vrcp.pop %v353
    %v413 = vmul.f32 %v240, %v412
    %v414 = vrcp.pop %v358
    %v415 = vmul.f32 %v245, %v414
    %v416 = vrcp.pop %v363
    %v417 = vmul.f32 %v250, %v416
    %v418 = vrcp.pop %v368
    %v419 = vmul.f32 %v255, %v418
    %v420 = vrcp.pop %v373
    %v421 = vmul.f32 %v260, %v420
    %v422 = vrcp.pop %v378
    %v423 = vmul.f32 %v265, %v422
    %v424 = vrcp.pop %v383
    %v425 = vmul.f32 %v270, %v424
    %v426 = vrcp.pop %v388
    %v427 = vmul.f32 %v275, %v426
    %v428 = vrcp.pop %v393
    %v429 = vmul.f32 %v280, %v428
    %v430 = vrcp.pop %v398
    %v431 = vmul.f32 %v285, %v430
    %vm432 = vcmask 31744
    %433 = vst.msk [vmem:[#allocation2] sm:$0xff] %vm432, %v401
    %434 = vst.msk [vmem:[#allocation2 + $0x8] sm:$0xff] %vm432, %v403
    %435 = vst.msk [vmem:[#allocation2 + $0x10] sm:$0xff] %vm432, %v405
    %436 = vst.msk [vmem:[#allocation2 + $0x18] sm:$0xff] %vm432, %v407
    %437 = vst.msk [vmem:[#allocation2 + $0x20] sm:$0xff] %vm432, %v409
    %438 = vst.msk [vmem:[#allocation2 + $0x28] sm:$0xff] %vm432, %v411
    %439 = vst.msk [vmem:[#allocation2 + $0x30] sm:$0xff] %vm432, %v413
    %440 = vst.msk [vmem:[#allocation2 + $0x38] sm:$0xff] %vm432, %v415
    %441 = vst.msk [vmem:[#allocation2 + $0x40] sm:$0xff] %vm432, %v417
    %442 = vst.msk [vmem:[#allocation2 + $0x48] sm:$0xff] %vm432, %v419
    %443 = vst.msk [vmem:[#allocation2 + $0x50] sm:$0xff] %vm432, %v421
    %444 = vst.msk [vmem:[#allocation2 + $0x58] sm:$0xff] %vm432, %v423
    %445 = vst.msk [vmem:[#allocation2 + $0x60] sm:$0xff] %vm432, %v425
    %446 = vst.msk [vmem:[#allocation2 + $0x68] sm:$0xff] %vm432, %v427
    %447 = vst.msk [vmem:[#allocation2 + $0x70] sm:$0xff] %vm432, %v429
    %448 = vst.msk [vmem:[#allocation2 + $0x78] sm:$0xff] %vm432, %v431
    // Predicated region
    $region10: #{tpu_custom_call.1} parent=1 // pred_check
      _
    $region11: #{tpu_custom_call.1} parent=1 // pred_check_branch
      %450 = sbr.rel (0) target = $region13
    $region12: #{tpu_custom_call.1} parent=1 // pred_region
      // Predicated region
      $region14: #{tpu_custom_call.1} parent=12 // pred_check
        _
      $region15: #{tpu_custom_call.1} parent=12 // pred_check_branch
        %452 = sbr.rel (0) target = $region17
      $region16: #{tpu_custom_call.1} parent=12 // pred_region
        // Predicated region
        $region18: #{tpu_custom_call.1} parent=16 // pred_check
          _
        $region19: #{tpu_custom_call.1} parent=16 // pred_check_branch
          %454 = sbr.rel (0) target = $region21
        $region20: #{tpu_custom_call.1} parent=16 // pred_region
          // Predicated region
          $region33: #{tpu_custom_call.1} parent=20 // pred_check
            _
          $region34: #{tpu_custom_call.1} parent=20 // pred_check_branch
            %494 = sbr.rel (0) target = $region36
          $region35: #{tpu_custom_call.1} parent=20 // pred_region
            loop: start=0, step=1, limit=1
            $region37: #{tpu_custom_call.1} parent=35 // loop_pre_header
              _
            $region38: #{tpu_custom_call.1} parent=35 // loop_header
              %s496 = sphi 0, %s500
              %p497 = scmp.ge.s32.totalorder %s496, 1
              %s501 = sphi [#allocation2], [#allocation2]
              %s502 = sphi %s2, %s2
            $region39: #{tpu_custom_call.1} parent=35 // loop_header_branch
              %499 = sbr.rel (%p497) target = $region43
            $region40: #{tpu_custom_call.1} parent=35 // loop_body
              %v503 = vld [vmem:[%s501] sm:$0xff]
              %504 = vst [vmem:[%s502] sm:$0xff] %v503
              %v505 = vld [vmem:[%s501 + $0x8] sm:$0xff]
              %506 = vst [vmem:[%s502 + $0x8] sm:$0xff] %v505
              %v507 = vld [vmem:[%s501 + $0x10] sm:$0xff]
              %508 = vst [vmem:[%s502 + $0x10] sm:$0xff] %v507
              %v509 = vld [vmem:[%s501 + $0x18] sm:$0xff]
              %510 = vst [vmem:[%s502 + $0x18] sm:$0xff] %v509
              %v511 = vld [vmem:[%s501 + $0x20] sm:$0xff]
              %512 = vst [vmem:[%s502 + $0x20] sm:$0xff] %v511
              %v513 = vld [vmem:[%s501 + $0x28] sm:$0xff]
              %514 = vst [vmem:[%s502 + $0x28] sm:$0xff] %v513
              %v515 = vld [vmem:[%s501 + $0x30] sm:$0xff]
              %516 = vst [vmem:[%s502 + $0x30] sm:$0xff] %v515
              %v517 = vld [vmem:[%s501 + $0x38] sm:$0xff]
              %518 = vst [vmem:[%s502 + $0x38] sm:$0xff] %v517
              %v519 = vld [vmem:[%s501 + $0x40] sm:$0xff]
              %520 = vst [vmem:[%s502 + $0x40] sm:$0xff] %v519
              %v521 = vld [vmem:[%s501 + $0x48] sm:$0xff]
              %522 = vst [vmem:[%s502 + $0x48] sm:$0xff] %v521
              %v523 = vld [vmem:[%s501 + $0x50] sm:$0xff]
              %524 = vst [vmem:[%s502 + $0x50] sm:$0xff] %v523
              %v525 = vld [vmem:[%s501 + $0x58] sm:$0xff]
              %526 = vst [vmem:[%s502 + $0x58] sm:$0xff] %v525
              %v527 = vld [vmem:[%s501 + $0x60] sm:$0xff]
              %528 = vst [vmem:[%s502 + $0x60] sm:$0xff] %v527
            $region41: #{tpu_custom_call.1} parent=35 // loop_footer
              %s500 = sadd.s32 1, %s496
            $region42: #{tpu_custom_call.1} parent=35 // loop_footer_branch
              %495 = sbr.rel target = $region38
            $region43: #{tpu_custom_call.1} parent=35 // loop_exit
              _
          $region36: #{tpu_custom_call.1} parent=20 // pred_fallthru
            _
          // Predicated region
          $region44: #{tpu_custom_call.1} parent=20 // pred_check
            _
          $region45: #{tpu_custom_call.1} parent=20 // pred_check_branch
            %530 = sbr.rel target = $region47
          $region46: #{tpu_custom_call.1} parent=20 // pred_region
            _
          $region47: #{tpu_custom_call.1} parent=20 // pred_fallthru
            _
        $region21: #{tpu_custom_call.1} parent=16 // pred_fallthru
          _
        // Predicated region
        $region22: #{tpu_custom_call.1} parent=16 // pred_check
          _
        $region23: #{tpu_custom_call.1} parent=16 // pred_check_branch
          %456 = sbr.rel target = $region25
        $region24: #{tpu_custom_call.1} parent=16 // pred_region
          %s458 = ssub.s32 256, 1
          loop: start=0, step=1, limit=1
          $region26: #{tpu_custom_call.1} parent=24 // loop_pre_header
            _
          $region27: #{tpu_custom_call.1} parent=24 // loop_header
            %s460 = sphi 0, %s464
            %p461 = scmp.ge.s32.totalorder %s460, 1
            %s465 = sphi [#allocation2], [#allocation2]
            %s466 = sphi %s2, %s2
          $region28: #{tpu_custom_call.1} parent=24 // loop_header_branch
            %463 = sbr.rel (%p461) target = $region32
          $region29: #{tpu_custom_call.1} parent=24 // loop_body
            %v467 = vld [vmem:[%s465] sm:%s458]
            %468 = vst [vmem:[%s466] sm:%s458] %v467
            %v469 = vld [vmem:[%s465 + $0x8] sm:%s458]
            %470 = vst [vmem:[%s466 + $0x8] sm:%s458] %v469
            %v471 = vld [vmem:[%s465 + $0x10] sm:%s458]
            %472 = vst [vmem:[%s466 + $0x10] sm:%s458] %v471
            %v473 = vld [vmem:[%s465 + $0x18] sm:%s458]
            %474 = vst [vmem:[%s466 + $0x18] sm:%s458] %v473
            %v475 = vld [vmem:[%s465 + $0x20] sm:%s458]
            %476 = vst [vmem:[%s466 + $0x20] sm:%s458] %v475
            %v477 = vld [vmem:[%s465 + $0x28] sm:%s458]
            %478 = vst [vmem:[%s466 + $0x28] sm:%s458] %v477
            %v479 = vld [vmem:[%s465 + $0x30] sm:%s458]
            %480 = vst [vmem:[%s466 + $0x30] sm:%s458] %v479
            %v481 = vld [vmem:[%s465 + $0x38] sm:%s458]
            %482 = vst [vmem:[%s466 + $0x38] sm:%s458] %v481
            %v483 = vld [vmem:[%s465 + $0x40] sm:%s458]
            %484 = vst [vmem:[%s466 + $0x40] sm:%s458] %v483
            %v485 = vld [vmem:[%s465 + $0x48] sm:%s458]
            %486 = vst [vmem:[%s466 + $0x48] sm:%s458] %v485
            %v487 = vld [vmem:[%s465 + $0x50] sm:%s458]
            %488 = vst [vmem:[%s466 + $0x50] sm:%s458] %v487
            %v489 = vld [vmem:[%s465 + $0x58] sm:%s458]
            %490 = vst [vmem:[%s466 + $0x58] sm:%s458] %v489
            %v491 = vld [vmem:[%s465 + $0x60] sm:%s458]
            %492 = vst [vmem:[%s466 + $0x60] sm:%s458] %v491
          $region30: #{tpu_custom_call.1} parent=24 // loop_footer
            %s464 = sadd.s32 1, %s460
          $region31: #{tpu_custom_call.1} parent=24 // loop_footer_branch
            %459 = sbr.rel target = $region27
          $region32: #{tpu_custom_call.1} parent=24 // loop_exit
            _
        $region25: #{tpu_custom_call.1} parent=16 // pred_fallthru
          _
      $region17: #{tpu_custom_call.1} parent=12 // pred_fallthru
        _
      %531 = vnop
    $region13: #{tpu_custom_call.1} parent=1 // pred_fallthru
      _
    // Predicated region
    $region48: #{tpu_custom_call.1} parent=1 // pred_check
      _
    $region49: #{tpu_custom_call.1} parent=1 // pred_check_branch
      %533 = sbr.rel (0) target = $region51
    $region50: #{tpu_custom_call.1} parent=1 // pred_region
      _
    $region51: #{tpu_custom_call.1} parent=1 // pred_fallthru
      _

</llo_original>
